<compile_context>
chip_gen: v6e
topology: v6e:2x2x1
jax: 0.10.0
libtpu: 0.0.40
codegen_flags: <defaults>
</compile_context>

<pallas_src>
import jax
import jax.numpy as jnp
import numpy as np
from jax.experimental import pallas as pl
from jax.experimental.pallas import tpu as pltpu


# ------------------------------ helpers ----------------------------------- #
def _round_up(v, m):
    return (v + m - 1) // m * m


def _dup_matrix(w, dtype):
    """(W, 4W) 0/1 selection matrix: output column r*2W + 2w + s <- input w."""
    cols = jnp.arange(4 * w)
    src = (cols % (2 * w)) // 2            # source input column of each output column
    return (jnp.arange(w)[:, None] == src[None, :]).astype(dtype)


def _pick_row_tile(m_rows, w, itemsize):
    """Row-tile size: big (<=1024) but VMEM-budgeted (fits v5e/v6e/v7x defaults)."""
    budget_bytes = 2 * 1024 * 1024         # per (input+output) tile; x2 for dbl-buffer
    per_row_bytes = 5 * w * itemsize       # W in + 4W out per row
    tm = min(1024, max(8, (budget_bytes // per_row_bytes) // 8 * 8))
    if m_rows <= tm:
        return _round_up(m_rows, 8)
    return tm


# ----------------------------- Pallas kernel ------------------------------ #
def _upsample_rows_kernel(x_ref, d_ref, o_ref):
    """o = x @ d : one MXU matmul, one lane-dense full-block store.

    x_ref: (TM, W)    tile of input rows (row = one (n, c, h) scanline).
    d_ref: (W, 4W)    constant 0/1 duplication matrix (exact gather-as-matmul).
    o_ref: (TM, 4W)   upsampled rows: [r=0 row (2W) | r=1 row (2W)] per input row.
    """
    o_ref[...] = jnp.dot(
        x_ref[...], d_ref[...],
        precision=jax.lax.Precision.HIGHEST,
        preferred_element_type=jnp.float32,
    ).astype(o_ref.dtype)


def _upsample_rows(x2, d2, tm):
    """x2: (Mp, W) -> (Mp, 4W) via row-tiled pallas_call."""
    mp, w = x2.shape
    return pl.pallas_call(
        _upsample_rows_kernel,
        out_shape=jax.ShapeDtypeStruct((mp, 4 * w), x2.dtype),
        grid_spec=pltpu.PrefetchScalarGridSpec(
            num_scalar_prefetch=0,
            grid=(mp // tm,),
            in_specs=[
                pl.BlockSpec((tm, w), lambda i: (i, 0)),
                pl.BlockSpec((w, 4 * w), lambda i: (0, 0)),   # constant block: DMA elided after step 0
            ],
            out_specs=pl.BlockSpec((tm, 4 * w), lambda i: (i, 0)),
        ),
        compiler_params=pltpu.CompilerParams(
            dimension_semantics=("parallel",)),
    )(x2, d2)


# ------------------------------ JAX wrapper -------------------------------- #
def upsample_layer_forward(x_nchw):
    """Equivalent of UpSampleLayer.forward: 2x nearest upsample, NCHW in/out."""
    n, c, h, w = x_nchw.shape
    m = n * c * h
    x2 = x_nchw.reshape(m, w)

    tm = _pick_row_tile(m, w, x2.dtype.itemsize)
    mp = pl.cdiv(m, tm) * tm
    if mp != m:                                   # pad rows instead of tm=M fallback
        x2 = jnp.pad(x2, ((0, mp - m), (0, 0)))

    d2 = _dup_matrix(w, x2.dtype)
    y = _upsample_rows(x2, d2, tm)                # (Mp, 4W)
    if mp != m:
        y = y[:m]

    # (M, 4W) == (N, C, H, [2, 2W]) --row-major--> (N, C, 2H, 2W): free reshape.
    return y.reshape(n, c, 2 * h, 2 * w)


# --------------------------------- main ------------------------------------ #
if __name__ == "__main__":
    key = jax.random.PRNGKey(0)
    x = jax.random.normal(key, (2, 4, 16, 16), jnp.float32)   # NCHW

    fwd = jax.jit(upsample_layer_forward)
    out = jax.block_until_ready(fwd(x))
    assert out.shape == (2, 4, 32, 32), out.shape

    # Pure-JAX reference of F.interpolate(scale_factor=2, mode='nearest').
    ref = jnp.repeat(jnp.repeat(x, 2, axis=2), 2, axis=3)
    np.testing.assert_allclose(np.asarray(out), np.asarray(ref),
                               rtol=1e-6, atol=1e-6)
    print("KERNEL_OK")
</pallas_src>

<mosaic_0001>
module attributes {stable_mosaic.version = 11 : i64} {
  func.func @_upsample_rows_kernel(%arg0: i32, %arg1: memref<128x16xf32, #tpu.memory_space<vmem>>, %arg2: memref<16x64xf32, #tpu.memory_space<vmem>>, %arg3: memref<128x64xf32, #tpu.memory_space<vmem>>) attributes {dimension_semantics = [#tpu.dimension_semantics<parallel>], iteration_bounds = array<i64: 1>, scalar_prefetch = 0 : i64, scratch_operands = 0 : i64, tpu.core_type = #tpu.core_type<tc>, window_params = [{transform_indices = @transform_0, window_bounds = array<i64: 128, 16>}, {pipeline_mode = #tpu.pipeline_mode<synchronous>, transform_indices = @transform_1, window_bounds = array<i64: 16, 64>}, {transform_indices = @transform_2, window_bounds = array<i64: 128, 64>}]} {
    %c0 = arith.constant 0 : index
    %c0_0 = arith.constant 0 : index
    %0 = vector.load %arg1[%c0, %c0_0] : memref<128x16xf32, #tpu.memory_space<vmem>>, vector<128x16xf32>
    %c0_1 = arith.constant 0 : index
    %c0_2 = arith.constant 0 : index
    %1 = vector.load %arg2[%c0_1, %c0_2] : memref<16x64xf32, #tpu.memory_space<vmem>>, vector<16x64xf32>
    %cst = arith.constant dense<0.000000e+00> : vector<128x64xf32>
    %2 = tpu.matmul %0, %1, %cst {dimension_numbers = #tpu.dot_dimension_numbers<[1], [0], [0], [1], [0, 0, 1, 1], [], []>, precision = #tpu.contract_precision<fp32>} : vector<128x16xf32>, vector<16x64xf32>, vector<128x64xf32> -> vector<128x64xf32>
    %c0_3 = arith.constant 0 : index
    %c0_4 = arith.constant 0 : index
    %3 = vector.load %arg3[%c0_3, %c0_4] : memref<128x64xf32, #tpu.memory_space<vmem>>, vector<128x64xf32>
    tpu.vector_store %arg3[%c0_3, %c0_4], %2 {strides = array<i32>} : memref<128x64xf32, #tpu.memory_space<vmem>>, vector<128x64xf32>,
    return
  }
  func.func @transform_0(%arg0: i32) -> (i32, i32) {
    %c0_i32 = arith.constant 0 : i32
    %c0_i32_0 = arith.constant 0 : i32
    return %arg0, %c0_i32 : i32, i32
  }
  func.func @transform_1(%arg0: i32) -> (i32, i32) {
    %c0_i32 = arith.constant 0 : i32
    %c0_i32_0 = arith.constant 0 : i32
    %c0_i32_1 = arith.constant 0 : i32
    return %c0_i32, %c0_i32_0 : i32, i32
  }
  func.func @transform_2(%arg0: i32) -> (i32, i32) {
    %c0_i32 = arith.constant 0 : i32
    %c0_i32_0 = arith.constant 0 : i32
    return %arg0, %c0_i32 : i32, i32
  }
}

</mosaic_0001>

<llo_original>
// kernel: upsample_layer_forward.1
$region0: #{upsample_layer_forward.1}
  #allocation0 [shape = 'u32[]', space=smem, size = 0x4, offset = 0x4, fixed_abs, tag = 'smem constant byte address 0x4 - core index']
  #allocation1 [shape = 'u32[144,128]{1,0:T(1,128)}', space=vmem, size = 0x12000, scoped, tag = 'internal scratch']
  %s0 = inlined_call_operand.hbm [shape: f32[128,16], index: 0, kind: input, shape index: {}]
  %s1 = inlined_call_operand.vmem [shape: f32[16,64], index: 1, kind: input, shape index: {}]
  %s2 = inlined_call_operand.vmem [shape: f32[128,64], index: 2, kind: output, shape index: {}]
  %s3 = sld [smem:[#allocation0]]
  $region22: #{upsample_layer_forward.1} parent=0
    _
  %s5 = ssub.s32 1, %s3
  %s6 = scalar_select 0, %s5, %s3
  $region1: #{upsample_layer_forward.1} parent=0
    #allocation2 [shape = 'u8[65536]{0}', space=vmem, size = 0x10000, scoped, tag = 'input window, operand 0, single buffered']
    #allocation3 [shape = 's32[1]{0}', space=sflag, size = 0x4, scoped, tag = 'scoped memory for upsample_layer_forward.1']
    %7 = vsyncpa [#allocation3], 0
    // Predicated region
    $region2: #{upsample_layer_forward.1} parent=1 // pred_check
      _
    $region3: #{upsample_layer_forward.1} parent=1 // pred_check_branch
      %9 = sbr.rel (0) target = $region5
    $region4: #{upsample_layer_forward.1} parent=1 // pred_region
      %s11 = ssub.s32 2048, 2048
      %12 = vsyncadd [#allocation3], %s11
      %s13 = sshll.u32 [#allocation2], 4
      %s14 = int_to_ptr.vmem [resolvable:$true] %s13
      %19 = dma.hbm_to_vmem [thread:$0]  %s0, 2048, %s14, [#allocation3], 128, 128, 8
    $region5: #{upsample_layer_forward.1} parent=1 // pred_fallthru
      _
    // Predicated region
    $region6: #{upsample_layer_forward.1} parent=1 // pred_check
      _
    $region7: #{upsample_layer_forward.1} parent=1 // pred_check_branch
      %21 = sbr.rel (0) target = $region9
    $region8: #{upsample_layer_forward.1} parent=1 // pred_region
      _
    $region9: #{upsample_layer_forward.1} parent=1 // pred_fallthru
      _
    // Predicated region
    $region10: #{upsample_layer_forward.1} parent=1 // pred_check
      _
    $region11: #{upsample_layer_forward.1} parent=1 // pred_check_branch
      %23 = sbr.rel (0) target = $region13
    $region12: #{upsample_layer_forward.1} parent=1 // pred_region
      %24 = dma.done [#allocation3], 2048
    $region13: #{upsample_layer_forward.1} parent=1 // pred_fallthru
      _
    %v25 = vld [vmem:[#allocation2] sm:$0xff]
    %v26 = vld [vmem:[#allocation2 + $0x8] sm:$0xff]
    %v27 = vld [vmem:[#allocation2 + $0x10] sm:$0xff]
    %v28 = vld [vmem:[#allocation2 + $0x18] sm:$0xff]
    %v29 = vld [vmem:[#allocation2 + $0x20] sm:$0xff]
    %v30 = vld [vmem:[#allocation2 + $0x28] sm:$0xff]
    %v31 = vld [vmem:[#allocation2 + $0x30] sm:$0xff]
    %v32 = vld [vmem:[#allocation2 + $0x38] sm:$0xff]
    %v33 = vld [vmem:[#allocation2 + $0x40] sm:$0xff]
    %v34 = vld [vmem:[#allocation2 + $0x48] sm:$0xff]
    %v35 = vld [vmem:[#allocation2 + $0x50] sm:$0xff]
    %v36 = vld [vmem:[#allocation2 + $0x58] sm:$0xff]
    %v37 = vld [vmem:[#allocation2 + $0x60] sm:$0xff]
    %v38 = vld [vmem:[#allocation2 + $0x68] sm:$0xff]
    %v39 = vld [vmem:[#allocation2 + $0x70] sm:$0xff]
    %v40 = vld [vmem:[#allocation2 + $0x78] sm:$0xff]
    %v41 = vld [vmem:[%s1] sm:$0xff]
    %v42 = vld [vmem:[%s1 + $0x8] sm:$0xff]
    %vm43 = vcmask 130048
    %v45 = vsel %vm43, %v25, 0
    %v48 = vsel %vm43, %v26, 0
    %v51 = vsel %vm43, %v27, 0
    %v54 = vsel %vm43, %v28, 0
    %v57 = vsel %vm43, %v29, 0
    %v60 = vsel %vm43, %v30, 0
    %v63 = vsel %vm43, %v31, 0
    %v66 = vsel %vm43, %v32, 0
    %v69 = vsel %vm43, %v33, 0
    %v72 = vsel %vm43, %v34, 0
    %v75 = vsel %vm43, %v35, 0
    %v78 = vsel %vm43, %v36, 0
    %v81 = vsel %vm43, %v37, 0
    %v84 = vsel %vm43, %v38, 0
    %v87 = vsel %vm43, %v39, 0
    %v90 = vsel %vm43, %v40, 0
    %92 = vmatprep.subr.mxu0 0.0
    %93 = vmatpush1.msra.mxu0 0.0
    %94 = vmatprep.subr.mxu0 0.0
    %95 = vmatpush1.msra.mxu0 0.0
    %96 = vmatprep.subr.mxu0 0.0
    %97 = vmatpush1.msra.mxu0 0.0
    %98 = vmatprep.subr.mxu0 0.0
    %99 = vmatpush1.msra.mxu0 0.0
    %100 = vmatprep.subr.mxu0 0.0
    %101 = vmatpush1.msra.mxu0 0.0
    %102 = vmatprep.subr.mxu0 0.0
    %103 = vmatpush1.msra.mxu0 0.0
    %104 = vmatprep.subr.mxu0 0.0
    %105 = vmatpush1.msra.mxu0 0.0
    %106 = vmatprep.subr.mxu0 0.0
    %107 = vmatpush1.msra.mxu0 0.0
    %108 = vmatprep.subr.mxu0 0.0
    %109 = vmatpush1.msra.mxu0 0.0
    %110 = vmatprep.subr.mxu0 0.0
    %111 = vmatpush1.msra.mxu0 0.0
    %112 = vmatprep.subr.mxu0 0.0
    %113 = vmatpush1.msra.mxu0 0.0
    %114 = vmatprep.subr.mxu0 0.0
    %115 = vmatpush1.msra.mxu0 0.0
    %116 = vmatprep.subr.mxu0 0.0
    %117 = vmatpush1.msra.mxu0 0.0
    %118 = vmatprep.subr.mxu0 0.0
    %119 = vmatpush1.msra.mxu0 0.0
    %120 = vmatprep.subr.mxu0 0.0
    %v121 = vand.u32 %v42, 4294901760
    %122 = vmatpush1.msra.mxu0 %v121
    %123 = vmatprep.subr.mxu0 0.0
    %v124 = vand.u32 %v41, 4294901760
    %125 = vmatpush1.msra.mxu0 %v124
    %126 = vmatprep.subr.mxu0 0.0
    %127 = vmatpush2.msra.mxu0 0.0
    %128 = vmatprep.subr.mxu0 0.0
    %129 = vmatpush2.msra.mxu0 0.0
    %130 = vmatprep.subr.mxu0 0.0
    %131 = vmatpush2.msra.mxu0 0.0
    %132 = vmatprep.subr.mxu0 0.0
    %133 = vmatpush2.msra.mxu0 0.0
    %134 = vmatprep.subr.mxu0 0.0
    %135 = vmatpush2.msra.mxu0 0.0
    %136 = vmatprep.subr.mxu0 0.0
    %137 = vmatpush2.msra.mxu0 0.0
    %138 = vmatprep.subr.mxu0 0.0
    %139 = vmatpush2.msra.mxu0 0.0
    %140 = vmatprep.subr.mxu0 0.0
    %141 = vmatpush2.msra.mxu0 0.0
    %142 = vmatprep.subr.mxu0 0.0
    %143 = vmatpush2.msra.mxu0 0.0
    %144 = vmatprep.subr.mxu0 0.0
    %145 = vmatpush2.msra.mxu0 0.0
    %146 = vmatprep.subr.mxu0 0.0
    %147 = vmatpush2.msra.mxu0 0.0
    %148 = vmatprep.subr.mxu0 0.0
    %149 = vmatpush2.msra.mxu0 0.0
    %150 = vmatprep.subr.mxu0 0.0
    %151 = vmatpush2.msra.mxu0 0.0
    %152 = vmatprep.subr.mxu0 0.0
    %153 = vmatpush2.msra.mxu0 0.0
    %154 = vmatprep.subr.mxu0 0.0
    %155 = vmatpush2.msra.mxu0 0.0
    %156 = vmatprep.subr.mxu0 0.0
    %157 = vmatpush2.msra.mxu0 0.0
    %158 = vmatprep.mubr.f32.mxu0 0.0
    %v159 = vand.u32 %v45, 4294901760
    %v160 = vsub.f32 %v45, %v159
    %v161 = vand.u32 %v160, 4294901760
    %v162 = vsub.f32 %v160, %v161
    %v163 = vand.u32 %v162, 4294901760
    %164 = vmatmul.mubr.f32.gmra.mxu0 %v163
    %v165 = vpop.f32.mrf.mxu0
    %v166 = vadd.f32 0.0, %v165
    %v167 = vpop.f32.mrf.mxu0
    %168 = vmatprep.mubr.f32.mxu0 0.0
    %v169 = vand.u32 %v48, 4294901760
    %v170 = vsub.f32 %v48, %v169
    %v171 = vand.u32 %v170, 4294901760
    %v172 = vsub.f32 %v170, %v171
    %v173 = vand.u32 %v172, 4294901760
    %174 = vmatmul.mubr.f32.gmra.mxu0 %v173
    %v175 = vpop.f32.mrf.mxu0
    %v176 = vadd.f32 0.0, %v175
    %v177 = vpop.f32.mrf.mxu0
    %178 = vmatprep.mubr.f32.mxu0 0.0
    %v179 = vand.u32 %v51, 4294901760
    %v180 = vsub.f32 %v51, %v179
    %v181 = vand.u32 %v180, 4294901760
    %v182 = vsub.f32 %v180, %v181
    %v183 = vand.u32 %v182, 4294901760
    %184 = vmatmul.mubr.f32.gmra.mxu0 %v183
    %v185 = vpop.f32.mrf.mxu0
    %v186 = vadd.f32 0.0, %v185
    %v187 = vpop.f32.mrf.mxu0
    %188 = vmatprep.mubr.f32.mxu0 0.0
    %v189 = vand.u32 %v54, 4294901760
    %v190 = vsub.f32 %v54, %v189
    %v191 = vand.u32 %v190, 4294901760
    %v192 = vsub.f32 %v190, %v191
    %v193 = vand.u32 %v192, 4294901760
    %194 = vmatmul.mubr.f32.gmra.mxu0 %v193
    %v195 = vpop.f32.mrf.mxu0
    %v196 = vadd.f32 0.0, %v195
    %v197 = vpop.f32.mrf.mxu0
    %198 = vmatprep.mubr.f32.mxu0 0.0
    %v199 = vand.u32 %v57, 4294901760
    %v200 = vsub.f32 %v57, %v199
    %v201 = vand.u32 %v200, 4294901760
    %v202 = vsub.f32 %v200, %v201
    %v203 = vand.u32 %v202, 4294901760
    %204 = vmatmul.mubr.f32.gmra.mxu0 %v203
    %v205 = vpop.f32.mrf.mxu0
    %v206 = vadd.f32 0.0, %v205
    %v207 = vpop.f32.mrf.mxu0
    %208 = vmatprep.mubr.f32.mxu0 0.0
    %v209 = vand.u32 %v60, 4294901760
    %v210 = vsub.f32 %v60, %v209
    %v211 = vand.u32 %v210, 4294901760
    %v212 = vsub.f32 %v210, %v211
    %v213 = vand.u32 %v212, 4294901760
    %214 = vmatmul.mubr.f32.gmra.mxu0 %v213
    %v215 = vpop.f32.mrf.mxu0
    %v216 = vadd.f32 0.0, %v215
    %v217 = vpop.f32.mrf.mxu0
    %218 = vmatprep.mubr.f32.mxu0 0.0
    %v219 = vand.u32 %v63, 4294901760
    %v220 = vsub.f32 %v63, %v219
    %v221 = vand.u32 %v220, 4294901760
    %v222 = vsub.f32 %v220, %v221
    %v223 = vand.u32 %v222, 4294901760
    %224 = vmatmul.mubr.f32.gmra.mxu0 %v223
    %v225 = vpop.f32.mrf.mxu0
    %v226 = vadd.f32 0.0, %v225
    %v227 = vpop.f32.mrf.mxu0
    %228 = vmatprep.mubr.f32.mxu0 0.0
    %v229 = vand.u32 %v66, 4294901760
    %v230 = vsub.f32 %v66, %v229
    %v231 = vand.u32 %v230, 4294901760
    %v232 = vsub.f32 %v230, %v231
    %v233 = vand.u32 %v232, 4294901760
    %234 = vmatmul.mubr.f32.gmra.mxu0 %v233
    %v235 = vpop.f32.mrf.mxu0
    %v236 = vadd.f32 0.0, %v235
    %v237 = vpop.f32.mrf.mxu0
    %238 = vmatprep.mubr.f32.mxu0 0.0
    %v239 = vand.u32 %v69, 4294901760
    %v240 = vsub.f32 %v69, %v239
    %v241 = vand.u32 %v240, 4294901760
    %v242 = vsub.f32 %v240, %v241
    %v243 = vand.u32 %v242, 4294901760
    %244 = vmatmul.mubr.f32.gmra.mxu0 %v243
    %v245 = vpop.f32.mrf.mxu0
    %v246 = vadd.f32 0.0, %v245
    %v247 = vpop.f32.mrf.mxu0
    %248 = vmatprep.mubr.f32.mxu0 0.0
    %v249 = vand.u32 %v72, 4294901760
    %v250 = vsub.f32 %v72, %v249
    %v251 = vand.u32 %v250, 4294901760
    %v252 = vsub.f32 %v250, %v251
    %v253 = vand.u32 %v252, 4294901760
    %254 = vmatmul.mubr.f32.gmra.mxu0 %v253
    %v255 = vpop.f32.mrf.mxu0
    %v256 = vadd.f32 0.0, %v255
    %v257 = vpop.f32.mrf.mxu0
    %258 = vmatprep.mubr.f32.mxu0 0.0
    %v259 = vand.u32 %v75, 4294901760
    %v260 = vsub.f32 %v75, %v259
    %v261 = vand.u32 %v260, 4294901760
    %v262 = vsub.f32 %v260, %v261
    %v263 = vand.u32 %v262, 4294901760
    %264 = vmatmul.mubr.f32.gmra.mxu0 %v263
    %v265 = vpop.f32.mrf.mxu0
    %v266 = vadd.f32 0.0, %v265
    %v267 = vpop.f32.mrf.mxu0
    %268 = vmatprep.mubr.f32.mxu0 0.0
    %v269 = vand.u32 %v78, 4294901760
    %v270 = vsub.f32 %v78, %v269
    %v271 = vand.u32 %v270, 4294901760
    %v272 = vsub.f32 %v270, %v271
    %v273 = vand.u32 %v272, 4294901760
    %274 = vmatmul.mubr.f32.gmra.mxu0 %v273
    %v275 = vpop.f32.mrf.mxu0
    %v276 = vadd.f32 0.0, %v275
    %v277 = vpop.f32.mrf.mxu0
    %278 = vmatprep.mubr.f32.mxu0 0.0
    %v279 = vand.u32 %v81, 4294901760
    %v280 = vsub.f32 %v81, %v279
    %v281 = vand.u32 %v280, 4294901760
    %v282 = vsub.f32 %v280, %v281
    %v283 = vand.u32 %v282, 4294901760
    %284 = vmatmul.mubr.f32.gmra.mxu0 %v283
    %v285 = vpop.f32.mrf.mxu0
    %v286 = vadd.f32 0.0, %v285
    %v287 = vpop.f32.mrf.mxu0
    %288 = vmatprep.mubr.f32.mxu0 0.0
    %v289 = vand.u32 %v84, 4294901760
    %v290 = vsub.f32 %v84, %v289
    %v291 = vand.u32 %v290, 4294901760
    %v292 = vsub.f32 %v290, %v291
    %v293 = vand.u32 %v292, 4294901760
    %294 = vmatmul.mubr.f32.gmra.mxu0 %v293
    %v295 = vpop.f32.mrf.mxu0
    %v296 = vadd.f32 0.0, %v295
    %v297 = vpop.f32.mrf.mxu0
    %298 = vmatprep.mubr.f32.mxu0 0.0
    %v299 = vand.u32 %v87, 4294901760
    %v300 = vsub.f32 %v87, %v299
    %v301 = vand.u32 %v300, 4294901760
    %v302 = vsub.f32 %v300, %v301
    %v303 = vand.u32 %v302, 4294901760
    %304 = vmatmul.mubr.f32.gmra.mxu0 %v303
    %v305 = vpop.f32.mrf.mxu0
    %v306 = vadd.f32 0.0, %v305
    %v307 = vpop.f32.mrf.mxu0
    %308 = vmatprep.mubr.f32.mxu0 0.0
    %v309 = vand.u32 %v90, 4294901760
    %v310 = vsub.f32 %v90, %v309
    %v311 = vand.u32 %v310, 4294901760
    %v312 = vsub.f32 %v310, %v311
    %v313 = vand.u32 %v312, 4294901760
    %314 = vmatmul.mubr.f32.gmra.mxu0 %v313
    %v315 = vpop.f32.mrf.mxu0
    %v316 = vadd.f32 0.0, %v315
    %v317 = vpop.f32.mrf.mxu0
    %318 = vdwg.mxu0
    %319 = vmatprep.subr.mxu0 0.0
    %320 = vmatpush1.msra.mxu0 0.0
    %321 = vmatprep.subr.mxu0 0.0
    %322 = vmatpush1.msra.mxu0 0.0
    %323 = vmatprep.subr.mxu0 0.0
    %324 = vmatpush1.msra.mxu0 0.0
    %325 = vmatprep.subr.mxu0 0.0
    %326 = vmatpush1.msra.mxu0 0.0
    %327 = vmatprep.subr.mxu0 0.0
    %328 = vmatpush1.msra.mxu0 0.0
    %329 = vmatprep.subr.mxu0 0.0
    %330 = vmatpush1.msra.mxu0 0.0
    %331 = vmatprep.subr.mxu0 0.0
    %332 = vmatpush1.msra.mxu0 0.0
    %333 = vmatprep.subr.mxu0 0.0
    %334 = vmatpush1.msra.mxu0 0.0
    %335 = vmatprep.subr.mxu0 0.0
    %336 = vmatpush1.msra.mxu0 0.0
    %337 = vmatprep.subr.mxu0 0.0
    %338 = vmatpush1.msra.mxu0 0.0
    %339 = vmatprep.subr.mxu0 0.0
    %340 = vmatpush1.msra.mxu0 0.0
    %341 = vmatprep.subr.mxu0 0.0
    %342 = vmatpush1.msra.mxu0 0.0
    %343 = vmatprep.subr.mxu0 0.0
    %344 = vmatpush1.msra.mxu0 0.0
    %345 = vmatprep.subr.mxu0 0.0
    %346 = vmatpush1.msra.mxu0 0.0
    %347 = vmatprep.subr.mxu0 0.0
    %v348 = vand.u32 %v42, 4294901760
    %v349 = vsub.f32 %v42, %v348
    %v350 = vand.u32 %v349, 4294901760
    %v351 = vsub.f32 %v349, %v350
    %v352 = vand.u32 %v351, 4294901760
    %353 = vmatpush1.msra.mxu0 %v352
    %354 = vmatprep.subr.mxu0 0.0
    %v355 = vand.u32 %v41, 4294901760
    %v356 = vsub.f32 %v41, %v355
    %v357 = vand.u32 %v356, 4294901760
    %v358 = vsub.f32 %v356, %v357
    %v359 = vand.u32 %v358, 4294901760
    %360 = vmatpush1.msra.mxu0 %v359
    %361 = vmatprep.subr.mxu0 0.0
    %362 = vmatpush2.msra.mxu0 0.0
    %363 = vmatprep.subr.mxu0 0.0
    %364 = vmatpush2.msra.mxu0 0.0
    %365 = vmatprep.subr.mxu0 0.0
    %366 = vmatpush2.msra.mxu0 0.0
    %367 = vmatprep.subr.mxu0 0.0
    %368 = vmatpush2.msra.mxu0 0.0
    %369 = vmatprep.subr.mxu0 0.0
    %370 = vmatpush2.msra.mxu0 0.0
    %371 = vmatprep.subr.mxu0 0.0
    %372 = vmatpush2.msra.mxu0 0.0
    %373 = vmatprep.subr.mxu0 0.0
    %374 = vmatpush2.msra.mxu0 0.0
    %375 = vmatprep.subr.mxu0 0.0
    %376 = vmatpush2.msra.mxu0 0.0
    %377 = vmatprep.subr.mxu0 0.0
    %378 = vmatpush2.msra.mxu0 0.0
    %379 = vmatprep.subr.mxu0 0.0
    %380 = vmatpush2.msra.mxu0 0.0
    %381 = vmatprep.subr.mxu0 0.0
    %382 = vmatpush2.msra.mxu0 0.0
    %383 = vmatprep.subr.mxu0 0.0
    %384 = vmatpush2.msra.mxu0 0.0
    %385 = vmatprep.subr.mxu0 0.0
    %386 = vmatpush2.msra.mxu0 0.0
    %387 = vmatprep.subr.mxu0 0.0
    %388 = vmatpush2.msra.mxu0 0.0
    %389 = vmatprep.subr.mxu0 0.0
    %390 = vmatpush2.msra.mxu0 0.0
    %391 = vmatprep.subr.mxu0 0.0
    %392 = vmatpush2.msra.mxu0 0.0
    %393 = vmatprep.mubr.f32.mxu0 0.0
    %v394 = vand.u32 %v45, 4294901760
    %395 = vmatmul.mubr.f32.gmra.mxu0 %v394
    %v396 = vpop.f32.mrf.mxu0
    %v397 = vadd.f32 %v166, %v396
    %v398 = vpop.f32.mrf.mxu0
    %399 = vmatprep.mubr.f32.mxu0 0.0
    %v400 = vand.u32 %v48, 4294901760
    %401 = vmatmul.mubr.f32.gmra.mxu0 %v400
    %v402 = vpop.f32.mrf.mxu0
    %v403 = vadd.f32 %v176, %v402
    %v404 = vpop.f32.mrf.mxu0
    %405 = vmatprep.mubr.f32.mxu0 0.0
    %v406 = vand.u32 %v51, 4294901760
    %407 = vmatmul.mubr.f32.gmra.mxu0 %v406
    %v408 = vpop.f32.mrf.mxu0
    %v409 = vadd.f32 %v186, %v408
    %v410 = vpop.f32.mrf.mxu0
    %411 = vmatprep.mubr.f32.mxu0 0.0
    %v412 = vand.u32 %v54, 4294901760
    %413 = vmatmul.mubr.f32.gmra.mxu0 %v412
    %v414 = vpop.f32.mrf.mxu0
    %v415 = vadd.f32 %v196, %v414
    %v416 = vpop.f32.mrf.mxu0
    %417 = vmatprep.mubr.f32.mxu0 0.0
    %v418 = vand.u32 %v57, 4294901760
    %419 = vmatmul.mubr.f32.gmra.mxu0 %v418
    %v420 = vpop.f32.mrf.mxu0
    %v421 = vadd.f32 %v206, %v420
    %v422 = vpop.f32.mrf.mxu0
    %423 = vmatprep.mubr.f32.mxu0 0.0
    %v424 = vand.u32 %v60, 4294901760
    %425 = vmatmul.mubr.f32.gmra.mxu0 %v424
    %v426 = vpop.f32.mrf.mxu0
    %v427 = vadd.f32 %v216, %v426
    %v428 = vpop.f32.mrf.mxu0
    %429 = vmatprep.mubr.f32.mxu0 0.0
    %v430 = vand.u32 %v63, 4294901760
    %431 = vmatmul.mubr.f32.gmra.mxu0 %v430
    %v432 = vpop.f32.mrf.mxu0
    %v433 = vadd.f32 %v226, %v432
    %v434 = vpop.f32.mrf.mxu0
    %435 = vmatprep.mubr.f32.mxu0 0.0
    %v436 = vand.u32 %v66, 4294901760
    %437 = vmatmul.mubr.f32.gmra.mxu0 %v436
    %v438 = vpop.f32.mrf.mxu0
    %v439 = vadd.f32 %v236, %v438
    %v440 = vpop.f32.mrf.mxu0
    %441 = vmatprep.mubr.f32.mxu0 0.0
    %v442 = vand.u32 %v69, 4294901760
    %443 = vmatmul.mubr.f32.gmra.mxu0 %v442
    %v444 = vpop.f32.mrf.mxu0
    %v445 = vadd.f32 %v246, %v444
    %v446 = vpop.f32.mrf.mxu0
    %447 = vmatprep.mubr.f32.mxu0 0.0
    %v448 = vand.u32 %v72, 4294901760
    %449 = vmatmul.mubr.f32.gmra.mxu0 %v448
    %v450 = vpop.f32.mrf.mxu0
    %v451 = vadd.f32 %v256, %v450
    %v452 = vpop.f32.mrf.mxu0
    %453 = vmatprep.mubr.f32.mxu0 0.0
    %v454 = vand.u32 %v75, 4294901760
    %455 = vmatmul.mubr.f32.gmra.mxu0 %v454
    %v456 = vpop.f32.mrf.mxu0
    %v457 = vadd.f32 %v266, %v456
    %v458 = vpop.f32.mrf.mxu0
    %459 = vmatprep.mubr.f32.mxu0 0.0
    %v460 = vand.u32 %v78, 4294901760
    %461 = vmatmul.mubr.f32.gmra.mxu0 %v460
    %v462 = vpop.f32.mrf.mxu0
    %v463 = vadd.f32 %v276, %v462
    %v464 = vpop.f32.mrf.mxu0
    %465 = vmatprep.mubr.f32.mxu0 0.0
    %v466 = vand.u32 %v81, 4294901760
    %467 = vmatmul.mubr.f32.gmra.mxu0 %v466
    %v468 = vpop.f32.mrf.mxu0
    %v469 = vadd.f32 %v286, %v468
    %v470 = vpop.f32.mrf.mxu0
    %471 = vmatprep.mubr.f32.mxu0 0.0
    %v472 = vand.u32 %v84, 4294901760
    %473 = vmatmul.mubr.f32.gmra.mxu0 %v472
    %v474 = vpop.f32.mrf.mxu0
    %v475 = vadd.f32 %v296, %v474
    %v476 = vpop.f32.mrf.mxu0
    %477 = vmatprep.mubr.f32.mxu0 0.0
    %v478 = vand.u32 %v87, 4294901760
    %479 = vmatmul.mubr.f32.gmra.mxu0 %v478
    %v480 = vpop.f32.mrf.mxu0
    %v481 = vadd.f32 %v306, %v480
    %v482 = vpop.f32.mrf.mxu0
    %483 = vmatprep.mubr.f32.mxu0 0.0
    %v484 = vand.u32 %v90, 4294901760
    %485 = vmatmul.mubr.f32.gmra.mxu0 %v484
    %v486 = vpop.f32.mrf.mxu0
    %v487 = vadd.f32 %v316, %v486
    %v488 = vpop.f32.mrf.mxu0
    %489 = vdwg.mxu0
    %490 = vmatprep.subr.mxu0 0.0
    %491 = vmatpush1.msra.mxu0 0.0
    %492 = vmatprep.subr.mxu0 0.0
    %493 = vmatpush1.msra.mxu0 0.0
    %494 = vmatprep.subr.mxu0 0.0
    %495 = vmatpush1.msra.mxu0 0.0
    %496 = vmatprep.subr.mxu0 0.0
    %497 = vmatpush1.msra.mxu0 0.0
    %498 = vmatprep.subr.mxu0 0.0
    %499 = vmatpush1.msra.mxu0 0.0
    %500 = vmatprep.subr.mxu0 0.0
    %501 = vmatpush1.msra.mxu0 0.0
    %502 = vmatprep.subr.mxu0 0.0
    %503 = vmatpush1.msra.mxu0 0.0
    %504 = vmatprep.subr.mxu0 0.0
    %505 = vmatpush1.msra.mxu0 0.0
    %506 = vmatprep.subr.mxu0 0.0
    %507 = vmatpush1.msra.mxu0 0.0
    %508 = vmatprep.subr.mxu0 0.0
    %509 = vmatpush1.msra.mxu0 0.0
    %510 = vmatprep.subr.mxu0 0.0
    %511 = vmatpush1.msra.mxu0 0.0
    %512 = vmatprep.subr.mxu0 0.0
    %513 = vmatpush1.msra.mxu0 0.0
    %514 = vmatprep.subr.mxu0 0.0
    %515 = vmatpush1.msra.mxu0 0.0
    %516 = vmatprep.subr.mxu0 0.0
    %517 = vmatpush1.msra.mxu0 0.0
    %518 = vmatprep.subr.mxu0 0.0
    %v519 = vand.u32 %v42, 4294901760
    %v520 = vsub.f32 %v42, %v519
    %521 = vmatpush1.msra.mxu0 %v520
    %522 = vmatprep.subr.mxu0 0.0
    %v523 = vand.u32 %v41, 4294901760
    %v524 = vsub.f32 %v41, %v523
    %525 = vmatpush1.msra.mxu0 %v524
    %526 = vmatprep.subr.mxu0 0.0
    %527 = vmatpush2.msra.mxu0 0.0
    %528 = vmatprep.subr.mxu0 0.0
    %529 = vmatpush2.msra.mxu0 0.0
    %530 = vmatprep.subr.mxu0 0.0
    %531 = vmatpush2.msra.mxu0 0.0
    %532 = vmatprep.subr.mxu0 0.0
    %533 = vmatpush2.msra.mxu0 0.0
    %534 = vmatprep.subr.mxu0 0.0
    %535 = vmatpush2.msra.mxu0 0.0
    %536 = vmatprep.subr.mxu0 0.0
    %537 = vmatpush2.msra.mxu0 0.0
    %538 = vmatprep.subr.mxu0 0.0
    %539 = vmatpush2.msra.mxu0 0.0
    %540 = vmatprep.subr.mxu0 0.0
    %541 = vmatpush2.msra.mxu0 0.0
    %542 = vmatprep.subr.mxu0 0.0
    %543 = vmatpush2.msra.mxu0 0.0
    %544 = vmatprep.subr.mxu0 0.0
    %545 = vmatpush2.msra.mxu0 0.0
    %546 = vmatprep.subr.mxu0 0.0
    %547 = vmatpush2.msra.mxu0 0.0
    %548 = vmatprep.subr.mxu0 0.0
    %549 = vmatpush2.msra.mxu0 0.0
    %550 = vmatprep.subr.mxu0 0.0
    %551 = vmatpush2.msra.mxu0 0.0
    %552 = vmatprep.subr.mxu0 0.0
    %553 = vmatpush2.msra.mxu0 0.0
    %554 = vmatprep.subr.mxu0 0.0
    %555 = vmatpush2.msra.mxu0 0.0
    %556 = vmatprep.subr.mxu0 0.0
    %557 = vmatpush2.msra.mxu0 0.0
    %558 = vmatprep.mubr.f32.mxu0 0.0
    %v559 = vand.u32 %v45, 4294901760
    %v560 = vsub.f32 %v45, %v559
    %561 = vmatmul.mubr.f32.gmra.mxu0 %v560
    %v562 = vpop.f32.mrf.mxu0
    %v563 = vadd.f32 %v397, %v562
    %v564 = vpop.f32.mrf.mxu0
    %565 = vmatprep.mubr.f32.mxu0 0.0
    %v566 = vand.u32 %v48, 4294901760
    %v567 = vsub.f32 %v48, %v566
    %568 = vmatmul.mubr.f32.gmra.mxu0 %v567
    %v569 = vpop.f32.mrf.mxu0
    %v570 = vadd.f32 %v403, %v569
    %v571 = vpop.f32.mrf.mxu0
    %572 = vmatprep.mubr.f32.mxu0 0.0
    %v573 = vand.u32 %v51, 4294901760
    %v574 = vsub.f32 %v51, %v573
    %575 = vmatmul.mubr.f32.gmra.mxu0 %v574
    %v576 = vpop.f32.mrf.mxu0
    %v577 = vadd.f32 %v409, %v576
    %v578 = vpop.f32.mrf.mxu0
    %579 = vmatprep.mubr.f32.mxu0 0.0
    %v580 = vand.u32 %v54, 4294901760
    %v581 = vsub.f32 %v54, %v580
    %582 = vmatmul.mubr.f32.gmra.mxu0 %v581
    %v583 = vpop.f32.mrf.mxu0
    %v584 = vadd.f32 %v415, %v583
    %v585 = vpop.f32.mrf.mxu0
    %586 = vmatprep.mubr.f32.mxu0 0.0
    %v587 = vand.u32 %v57, 4294901760
    %v588 = vsub.f32 %v57, %v587
    %589 = vmatmul.mubr.f32.gmra.mxu0 %v588
    %v590 = vpop.f32.mrf.mxu0
    %v591 = vadd.f32 %v421, %v590
    %v592 = vpop.f32.mrf.mxu0
    %593 = vmatprep.mubr.f32.mxu0 0.0
    %v594 = vand.u32 %v60, 4294901760
    %v595 = vsub.f32 %v60, %v594
    %596 = vmatmul.mubr.f32.gmra.mxu0 %v595
    %v597 = vpop.f32.mrf.mxu0
    %v598 = vadd.f32 %v427, %v597
    %v599 = vpop.f32.mrf.mxu0
    %600 = vmatprep.mubr.f32.mxu0 0.0
    %v601 = vand.u32 %v63, 4294901760
    %v602 = vsub.f32 %v63, %v601
    %603 = vmatmul.mubr.f32.gmra.mxu0 %v602
    %v604 = vpop.f32.mrf.mxu0
    %v605 = vadd.f32 %v433, %v604
    %v606 = vpop.f32.mrf.mxu0
    %607 = vmatprep.mubr.f32.mxu0 0.0
    %v608 = vand.u32 %v66, 4294901760
    %v609 = vsub.f32 %v66, %v608
    %610 = vmatmul.mubr.f32.gmra.mxu0 %v609
    %v611 = vpop.f32.mrf.mxu0
    %v612 = vadd.f32 %v439, %v611
    %v613 = vpop.f32.mrf.mxu0
    %614 = vmatprep.mubr.f32.mxu0 0.0
    %v615 = vand.u32 %v69, 4294901760
    %v616 = vsub.f32 %v69, %v615
    %617 = vmatmul.mubr.f32.gmra.mxu0 %v616
    %v618 = vpop.f32.mrf.mxu0
    %v619 = vadd.f32 %v445, %v618
    %v620 = vpop.f32.mrf.mxu0
    %621 = vmatprep.mubr.f32.mxu0 0.0
    %v622 = vand.u32 %v72, 4294901760
    %v623 = vsub.f32 %v72, %v622
    %624 = vmatmul.mubr.f32.gmra.mxu0 %v623
    %v625 = vpop.f32.mrf.mxu0
    %v626 = vadd.f32 %v451, %v625
    %v627 = vpop.f32.mrf.mxu0
    %628 = vmatprep.mubr.f32.mxu0 0.0
    %v629 = vand.u32 %v75, 4294901760
    %v630 = vsub.f32 %v75, %v629
    %631 = vmatmul.mubr.f32.gmra.mxu0 %v630
    %v632 = vpop.f32.mrf.mxu0
    %v633 = vadd.f32 %v457, %v632
    %v634 = vpop.f32.mrf.mxu0
    %635 = vmatprep.mubr.f32.mxu0 0.0
    %v636 = vand.u32 %v78, 4294901760
    %v637 = vsub.f32 %v78, %v636
    %638 = vmatmul.mubr.f32.gmra.mxu0 %v637
    %v639 = vpop.f32.mrf.mxu0
    %v640 = vadd.f32 %v463, %v639
    %v641 = vpop.f32.mrf.mxu0
    %642 = vmatprep.mubr.f32.mxu0 0.0
    %v643 = vand.u32 %v81, 4294901760
    %v644 = vsub.f32 %v81, %v643
    %645 = vmatmul.mubr.f32.gmra.mxu0 %v644
    %v646 = vpop.f32.mrf.mxu0
    %v647 = vadd.f32 %v469, %v646
    %v648 = vpop.f32.mrf.mxu0
    %649 = vmatprep.mubr.f32.mxu0 0.0
    %v650 = vand.u32 %v84, 4294901760
    %v651 = vsub.f32 %v84, %v650
    %652 = vmatmul.mubr.f32.gmra.mxu0 %v651
    %v653 = vpop.f32.mrf.mxu0
    %v654 = vadd.f32 %v475, %v653
    %v655 = vpop.f32.mrf.mxu0
    %656 = vmatprep.mubr.f32.mxu0 0.0
    %v657 = vand.u32 %v87, 4294901760
    %v658 = vsub.f32 %v87, %v657
    %659 = vmatmul.mubr.f32.gmra.mxu0 %v658
    %v660 = vpop.f32.mrf.mxu0
    %v661 = vadd.f32 %v481, %v660
    %v662 = vpop.f32.mrf.mxu0
    %663 = vmatprep.mubr.f32.mxu0 0.0
    %v664 = vand.u32 %v90, 4294901760
    %v665 = vsub.f32 %v90, %v664
    %666 = vmatmul.mubr.f32.gmra.mxu0 %v665
    %v667 = vpop.f32.mrf.mxu0
    %v668 = vadd.f32 %v487, %v667
    %v669 = vpop.f32.mrf.mxu0
    %670 = vdwg.mxu0
    %671 = vmatprep.subr.mxu0 0.0
    %672 = vmatpush1.msra.mxu0 0.0
    %673 = vmatprep.subr.mxu0 0.0
    %674 = vmatpush1.msra.mxu0 0.0
    %675 = vmatprep.subr.mxu0 0.0
    %676 = vmatpush1.msra.mxu0 0.0
    %677 = vmatprep.subr.mxu0 0.0
    %678 = vmatpush1.msra.mxu0 0.0
    %679 = vmatprep.subr.mxu0 0.0
    %680 = vmatpush1.msra.mxu0 0.0
    %681 = vmatprep.subr.mxu0 0.0
    %682 = vmatpush1.msra.mxu0 0.0
    %683 = vmatprep.subr.mxu0 0.0
    %684 = vmatpush1.msra.mxu0 0.0
    %685 = vmatprep.subr.mxu0 0.0
    %686 = vmatpush1.msra.mxu0 0.0
    %687 = vmatprep.subr.mxu0 0.0
    %688 = vmatpush1.msra.mxu0 0.0
    %689 = vmatprep.subr.mxu0 0.0
    %690 = vmatpush1.msra.mxu0 0.0
    %691 = vmatprep.subr.mxu0 0.0
    %692 = vmatpush1.msra.mxu0 0.0
    %693 = vmatprep.subr.mxu0 0.0
    %694 = vmatpush1.msra.mxu0 0.0
    %695 = vmatprep.subr.mxu0 0.0
    %696 = vmatpush1.msra.mxu0 0.0
    %697 = vmatprep.subr.mxu0 0.0
    %698 = vmatpush1.msra.mxu0 0.0
    %699 = vmatprep.subr.mxu0 0.0
    %v700 = vand.u32 %v42, 4294901760
    %701 = vmatpush1.msra.mxu0 %v700
    %702 = vmatprep.subr.mxu0 0.0
    %v703 = vand.u32 %v41, 4294901760
    %704 = vmatpush1.msra.mxu0 %v703
    %705 = vmatprep.subr.mxu0 0.0
    %706 = vmatpush2.msra.mxu0 0.0
    %707 = vmatprep.subr.mxu0 0.0
    %708 = vmatpush2.msra.mxu0 0.0
    %709 = vmatprep.subr.mxu0 0.0
    %710 = vmatpush2.msra.mxu0 0.0
    %711 = vmatprep.subr.mxu0 0.0
    %712 = vmatpush2.msra.mxu0 0.0
    %713 = vmatprep.subr.mxu0 0.0
    %714 = vmatpush2.msra.mxu0 0.0
    %715 = vmatprep.subr.mxu0 0.0
    %716 = vmatpush2.msra.mxu0 0.0
    %717 = vmatprep.subr.mxu0 0.0
    %718 = vmatpush2.msra.mxu0 0.0
    %719 = vmatprep.subr.mxu0 0.0
    %720 = vmatpush2.msra.mxu0 0.0
    %721 = vmatprep.subr.mxu0 0.0
    %722 = vmatpush2.msra.mxu0 0.0
    %723 = vmatprep.subr.mxu0 0.0
    %724 = vmatpush2.msra.mxu0 0.0
    %725 = vmatprep.subr.mxu0 0.0
    %726 = vmatpush2.msra.mxu0 0.0
    %727 = vmatprep.subr.mxu0 0.0
    %728 = vmatpush2.msra.mxu0 0.0
    %729 = vmatprep.subr.mxu0 0.0
    %730 = vmatpush2.msra.mxu0 0.0
    %731 = vmatprep.subr.mxu0 0.0
    %732 = vmatpush2.msra.mxu0 0.0
    %733 = vmatprep.subr.mxu0 0.0
    %734 = vmatpush2.msra.mxu0 0.0
    %735 = vmatprep.subr.mxu0 0.0
    %736 = vmatpush2.msra.mxu0 0.0
    %737 = vmatprep.mubr.f32.mxu0 0.0
    %v738 = vand.u32 %v45, 4294901760
    %v739 = vsub.f32 %v45, %v738
    %v740 = vand.u32 %v739, 4294901760
    %741 = vmatmul.mubr.f32.gmra.mxu0 %v740
    %v742 = vpop.f32.mrf.mxu0
    %v743 = vadd.f32 %v563, %v742
    %v744 = vpop.f32.mrf.mxu0
    %745 = vmatprep.mubr.f32.mxu0 0.0
    %v746 = vand.u32 %v48, 4294901760
    %v747 = vsub.f32 %v48, %v746
    %v748 = vand.u32 %v747, 4294901760
    %749 = vmatmul.mubr.f32.gmra.mxu0 %v748
    %v750 = vpop.f32.mrf.mxu0
    %v751 = vadd.f32 %v570, %v750
    %v752 = vpop.f32.mrf.mxu0
    %753 = vmatprep.mubr.f32.mxu0 0.0
    %v754 = vand.u32 %v51, 4294901760
    %v755 = vsub.f32 %v51, %v754
    %v756 = vand.u32 %v755, 4294901760
    %757 = vmatmul.mubr.f32.gmra.mxu0 %v756
    %v758 = vpop.f32.mrf.mxu0
    %v759 = vadd.f32 %v577, %v758
    %v760 = vpop.f32.mrf.mxu0
    %761 = vmatprep.mubr.f32.mxu0 0.0
    %v762 = vand.u32 %v54, 4294901760
    %v763 = vsub.f32 %v54, %v762
    %v764 = vand.u32 %v763, 4294901760
    %765 = vmatmul.mubr.f32.gmra.mxu0 %v764
    %v766 = vpop.f32.mrf.mxu0
    %v767 = vadd.f32 %v584, %v766
    %v768 = vpop.f32.mrf.mxu0
    %769 = vmatprep.mubr.f32.mxu0 0.0
    %v770 = vand.u32 %v57, 4294901760
    %v771 = vsub.f32 %v57, %v770
    %v772 = vand.u32 %v771, 4294901760
    %773 = vmatmul.mubr.f32.gmra.mxu0 %v772
    %v774 = vpop.f32.mrf.mxu0
    %v775 = vadd.f32 %v591, %v774
    %v776 = vpop.f32.mrf.mxu0
    %777 = vmatprep.mubr.f32.mxu0 0.0
    %v778 = vand.u32 %v60, 4294901760
    %v779 = vsub.f32 %v60, %v778
    %v780 = vand.u32 %v779, 4294901760
    %781 = vmatmul.mubr.f32.gmra.mxu0 %v780
    %v782 = vpop.f32.mrf.mxu0
    %v783 = vadd.f32 %v598, %v782
    %v784 = vpop.f32.mrf.mxu0
    %785 = vmatprep.mubr.f32.mxu0 0.0
    %v786 = vand.u32 %v63, 4294901760
    %v787 = vsub.f32 %v63, %v786
    %v788 = vand.u32 %v787, 4294901760
    %789 = vmatmul.mubr.f32.gmra.mxu0 %v788
    %v790 = vpop.f32.mrf.mxu0
    %v791 = vadd.f32 %v605, %v790
    %v792 = vpop.f32.mrf.mxu0
    %793 = vmatprep.mubr.f32.mxu0 0.0
    %v794 = vand.u32 %v66, 4294901760
    %v795 = vsub.f32 %v66, %v794
    %v796 = vand.u32 %v795, 4294901760
    %797 = vmatmul.mubr.f32.gmra.mxu0 %v796
    %v798 = vpop.f32.mrf.mxu0
    %v799 = vadd.f32 %v612, %v798
    %v800 = vpop.f32.mrf.mxu0
    %801 = vmatprep.mubr.f32.mxu0 0.0
    %v802 = vand.u32 %v69, 4294901760
    %v803 = vsub.f32 %v69, %v802
    %v804 = vand.u32 %v803, 4294901760
    %805 = vmatmul.mubr.f32.gmra.mxu0 %v804
    %v806 = vpop.f32.mrf.mxu0
    %v807 = vadd.f32 %v619, %v806
    %v808 = vpop.f32.mrf.mxu0
    %809 = vmatprep.mubr.f32.mxu0 0.0
    %v810 = vand.u32 %v72, 4294901760
    %v811 = vsub.f32 %v72, %v810
    %v812 = vand.u32 %v811, 4294901760
    %813 = vmatmul.mubr.f32.gmra.mxu0 %v812
    %v814 = vpop.f32.mrf.mxu0
    %v815 = vadd.f32 %v626, %v814
    %v816 = vpop.f32.mrf.mxu0
    %817 = vmatprep.mubr.f32.mxu0 0.0
    %v818 = vand.u32 %v75, 4294901760
    %v819 = vsub.f32 %v75, %v818
    %v820 = vand.u32 %v819, 4294901760
    %821 = vmatmul.mubr.f32.gmra.mxu0 %v820
    %v822 = vpop.f32.mrf.mxu0
    %v823 = vadd.f32 %v633, %v822
    %v824 = vpop.f32.mrf.mxu0
    %825 = vmatprep.mubr.f32.mxu0 0.0
    %v826 = vand.u32 %v78, 4294901760
    %v827 = vsub.f32 %v78, %v826
    %v828 = vand.u32 %v827, 4294901760
    %829 = vmatmul.mubr.f32.gmra.mxu0 %v828
    %v830 = vpop.f32.mrf.mxu0
    %v831 = vadd.f32 %v640, %v830
    %v832 = vpop.f32.mrf.mxu0
    %833 = vmatprep.mubr.f32.mxu0 0.0
    %v834 = vand.u32 %v81, 4294901760
    %v835 = vsub.f32 %v81, %v834
    %v836 = vand.u32 %v835, 4294901760
    %837 = vmatmul.mubr.f32.gmra.mxu0 %v836
    %v838 = vpop.f32.mrf.mxu0
    %v839 = vadd.f32 %v647, %v838
    %v840 = vpop.f32.mrf.mxu0
    %841 = vmatprep.mubr.f32.mxu0 0.0
    %v842 = vand.u32 %v84, 4294901760
    %v843 = vsub.f32 %v84, %v842
    %v844 = vand.u32 %v843, 4294901760
    %845 = vmatmul.mubr.f32.gmra.mxu0 %v844
    %v846 = vpop.f32.mrf.mxu0
    %v847 = vadd.f32 %v654, %v846
    %v848 = vpop.f32.mrf.mxu0
    %849 = vmatprep.mubr.f32.mxu0 0.0
    %v850 = vand.u32 %v87, 4294901760
    %v851 = vsub.f32 %v87, %v850
    %v852 = vand.u32 %v851, 4294901760
    %853 = vmatmul.mubr.f32.gmra.mxu0 %v852
    %v854 = vpop.f32.mrf.mxu0
    %v855 = vadd.f32 %v661, %v854
    %v856 = vpop.f32.mrf.mxu0
    %857 = vmatprep.mubr.f32.mxu0 0.0
    %v858 = vand.u32 %v90, 4294901760
    %v859 = vsub.f32 %v90, %v858
    %v860 = vand.u32 %v859, 4294901760
    %861 = vmatmul.mubr.f32.gmra.mxu0 %v860
    %v862 = vpop.f32.mrf.mxu0
    %v863 = vadd.f32 %v668, %v862
    %v864 = vpop.f32.mrf.mxu0
    %865 = vdwg.mxu0
    %866 = vmatprep.subr.mxu0 0.0
    %867 = vmatpush1.msra.mxu0 0.0
    %868 = vmatprep.subr.mxu0 0.0
    %869 = vmatpush1.msra.mxu0 0.0
    %870 = vmatprep.subr.mxu0 0.0
    %871 = vmatpush1.msra.mxu0 0.0
    %872 = vmatprep.subr.mxu0 0.0
    %873 = vmatpush1.msra.mxu0 0.0
    %874 = vmatprep.subr.mxu0 0.0
    %875 = vmatpush1.msra.mxu0 0.0
    %876 = vmatprep.subr.mxu0 0.0
    %877 = vmatpush1.msra.mxu0 0.0
    %878 = vmatprep.subr.mxu0 0.0
    %879 = vmatpush1.msra.mxu0 0.0
    %880 = vmatprep.subr.mxu0 0.0
    %881 = vmatpush1.msra.mxu0 0.0
    %882 = vmatprep.subr.mxu0 0.0
    %883 = vmatpush1.msra.mxu0 0.0
    %884 = vmatprep.subr.mxu0 0.0
    %885 = vmatpush1.msra.mxu0 0.0
    %886 = vmatprep.subr.mxu0 0.0
    %887 = vmatpush1.msra.mxu0 0.0
    %888 = vmatprep.subr.mxu0 0.0
    %889 = vmatpush1.msra.mxu0 0.0
    %890 = vmatprep.subr.mxu0 0.0
    %891 = vmatpush1.msra.mxu0 0.0
    %892 = vmatprep.subr.mxu0 0.0
    %893 = vmatpush1.msra.mxu0 0.0
    %894 = vmatprep.subr.mxu0 0.0
    %v895 = vand.u32 %v42, 4294901760
    %v896 = vsub.f32 %v42, %v895
    %v897 = vand.u32 %v896, 4294901760
    %898 = vmatpush1.msra.mxu0 %v897
    %899 = vmatprep.subr.mxu0 0.0
    %v900 = vand.u32 %v41, 4294901760
    %v901 = vsub.f32 %v41, %v900
    %v902 = vand.u32 %v901, 4294901760
    %903 = vmatpush1.msra.mxu0 %v902
    %904 = vmatprep.subr.mxu0 0.0
    %905 = vmatpush2.msra.mxu0 0.0
    %906 = vmatprep.subr.mxu0 0.0
    %907 = vmatpush2.msra.mxu0 0.0
    %908 = vmatprep.subr.mxu0 0.0
    %909 = vmatpush2.msra.mxu0 0.0
    %910 = vmatprep.subr.mxu0 0.0
    %911 = vmatpush2.msra.mxu0 0.0
    %912 = vmatprep.subr.mxu0 0.0
    %913 = vmatpush2.msra.mxu0 0.0
    %914 = vmatprep.subr.mxu0 0.0
    %915 = vmatpush2.msra.mxu0 0.0
    %916 = vmatprep.subr.mxu0 0.0
    %917 = vmatpush2.msra.mxu0 0.0
    %918 = vmatprep.subr.mxu0 0.0
    %919 = vmatpush2.msra.mxu0 0.0
    %920 = vmatprep.subr.mxu0 0.0
    %921 = vmatpush2.msra.mxu0 0.0
    %922 = vmatprep.subr.mxu0 0.0
    %923 = vmatpush2.msra.mxu0 0.0
    %924 = vmatprep.subr.mxu0 0.0
    %925 = vmatpush2.msra.mxu0 0.0
    %926 = vmatprep.subr.mxu0 0.0
    %927 = vmatpush2.msra.mxu0 0.0
    %928 = vmatprep.subr.mxu0 0.0
    %929 = vmatpush2.msra.mxu0 0.0
    %930 = vmatprep.subr.mxu0 0.0
    %931 = vmatpush2.msra.mxu0 0.0
    %932 = vmatprep.subr.mxu0 0.0
    %933 = vmatpush2.msra.mxu0 0.0
    %934 = vmatprep.subr.mxu0 0.0
    %935 = vmatpush2.msra.mxu0 0.0
    %936 = vmatprep.mubr.f32.mxu0 0.0
    %v937 = vand.u32 %v45, 4294901760
    %938 = vmatmul.mubr.f32.gmra.mxu0 %v937
    %v939 = vpop.f32.mrf.mxu0
    %v940 = vadd.f32 %v743, %v939
    %v941 = vpop.f32.mrf.mxu0
    %942 = vmatprep.mubr.f32.mxu0 0.0
    %v943 = vand.u32 %v48, 4294901760
    %944 = vmatmul.mubr.f32.gmra.mxu0 %v943
    %v945 = vpop.f32.mrf.mxu0
    %v946 = vadd.f32 %v751, %v945
    %v947 = vpop.f32.mrf.mxu0
    %948 = vmatprep.mubr.f32.mxu0 0.0
    %v949 = vand.u32 %v51, 4294901760
    %950 = vmatmul.mubr.f32.gmra.mxu0 %v949
    %v951 = vpop.f32.mrf.mxu0
    %v952 = vadd.f32 %v759, %v951
    %v953 = vpop.f32.mrf.mxu0
    %954 = vmatprep.mubr.f32.mxu0 0.0
    %v955 = vand.u32 %v54, 4294901760
    %956 = vmatmul.mubr.f32.gmra.mxu0 %v955
    %v957 = vpop.f32.mrf.mxu0
    %v958 = vadd.f32 %v767, %v957
    %v959 = vpop.f32.mrf.mxu0
    %960 = vmatprep.mubr.f32.mxu0 0.0
    %v961 = vand.u32 %v57, 4294901760
    %962 = vmatmul.mubr.f32.gmra.mxu0 %v961
    %v963 = vpop.f32.mrf.mxu0
    %v964 = vadd.f32 %v775, %v963
    %v965 = vpop.f32.mrf.mxu0
    %966 = vmatprep.mubr.f32.mxu0 0.0
    %v967 = vand.u32 %v60, 4294901760
    %968 = vmatmul.mubr.f32.gmra.mxu0 %v967
    %v969 = vpop.f32.mrf.mxu0
    %v970 = vadd.f32 %v783, %v969
    %v971 = vpop.f32.mrf.mxu0
    %972 = vmatprep.mubr.f32.mxu0 0.0
    %v973 = vand.u32 %v63, 4294901760
    %974 = vmatmul.mubr.f32.gmra.mxu0 %v973
    %v975 = vpop.f32.mrf.mxu0
    %v976 = vadd.f32 %v791, %v975
    %v977 = vpop.f32.mrf.mxu0
    %978 = vmatprep.mubr.f32.mxu0 0.0
    %v979 = vand.u32 %v66, 4294901760
    %980 = vmatmul.mubr.f32.gmra.mxu0 %v979
    %v981 = vpop.f32.mrf.mxu0
    %v982 = vadd.f32 %v799, %v981
    %v983 = vpop.f32.mrf.mxu0
    %984 = vmatprep.mubr.f32.mxu0 0.0
    %v985 = vand.u32 %v69, 4294901760
    %986 = vmatmul.mubr.f32.gmra.mxu0 %v985
    %v987 = vpop.f32.mrf.mxu0
    %v988 = vadd.f32 %v807, %v987
    %v989 = vpop.f32.mrf.mxu0
    %990 = vmatprep.mubr.f32.mxu0 0.0
    %v991 = vand.u32 %v72, 4294901760
    %992 = vmatmul.mubr.f32.gmra.mxu0 %v991
    %v993 = vpop.f32.mrf.mxu0
    %v994 = vadd.f32 %v815, %v993
    %v995 = vpop.f32.mrf.mxu0
    %996 = vmatprep.mubr.f32.mxu0 0.0
    %v997 = vand.u32 %v75, 4294901760
    %998 = vmatmul.mubr.f32.gmra.mxu0 %v997
    %v999 = vpop.f32.mrf.mxu0
    %v1000 = vadd.f32 %v823, %v999
    %v1001 = vpop.f32.mrf.mxu0
    %1002 = vmatprep.mubr.f32.mxu0 0.0
    %v1003 = vand.u32 %v78, 4294901760
    %1004 = vmatmul.mubr.f32.gmra.mxu0 %v1003
    %v1005 = vpop.f32.mrf.mxu0
    %v1006 = vadd.f32 %v831, %v1005
    %v1007 = vpop.f32.mrf.mxu0
    %1008 = vmatprep.mubr.f32.mxu0 0.0
    %v1009 = vand.u32 %v81, 4294901760
    %1010 = vmatmul.mubr.f32.gmra.mxu0 %v1009
    %v1011 = vpop.f32.mrf.mxu0
    %v1012 = vadd.f32 %v839, %v1011
    %v1013 = vpop.f32.mrf.mxu0
    %1014 = vmatprep.mubr.f32.mxu0 0.0
    %v1015 = vand.u32 %v84, 4294901760
    %1016 = vmatmul.mubr.f32.gmra.mxu0 %v1015
    %v1017 = vpop.f32.mrf.mxu0
    %v1018 = vadd.f32 %v847, %v1017
    %v1019 = vpop.f32.mrf.mxu0
    %1020 = vmatprep.mubr.f32.mxu0 0.0
    %v1021 = vand.u32 %v87, 4294901760
    %1022 = vmatmul.mubr.f32.gmra.mxu0 %v1021
    %v1023 = vpop.f32.mrf.mxu0
    %v1024 = vadd.f32 %v855, %v1023
    %v1025 = vpop.f32.mrf.mxu0
    %1026 = vmatprep.mubr.f32.mxu0 0.0
    %v1027 = vand.u32 %v90, 4294901760
    %1028 = vmatmul.mubr.f32.gmra.mxu0 %v1027
    %v1029 = vpop.f32.mrf.mxu0
    %v1030 = vadd.f32 %v863, %v1029
    %v1031 = vpop.f32.mrf.mxu0
    %1032 = vdwg.mxu0
    %1033 = vmatprep.subr.mxu0 0.0
    %1034 = vmatpush1.msra.mxu0 0.0
    %1035 = vmatprep.subr.mxu0 0.0
    %1036 = vmatpush1.msra.mxu0 0.0
    %1037 = vmatprep.subr.mxu0 0.0
    %1038 = vmatpush1.msra.mxu0 0.0
    %1039 = vmatprep.subr.mxu0 0.0
    %1040 = vmatpush1.msra.mxu0 0.0
    %1041 = vmatprep.subr.mxu0 0.0
    %1042 = vmatpush1.msra.mxu0 0.0
    %1043 = vmatprep.subr.mxu0 0.0
    %1044 = vmatpush1.msra.mxu0 0.0
    %1045 = vmatprep.subr.mxu0 0.0
    %1046 = vmatpush1.msra.mxu0 0.0
    %1047 = vmatprep.subr.mxu0 0.0
    %1048 = vmatpush1.msra.mxu0 0.0
    %1049 = vmatprep.subr.mxu0 0.0
    %1050 = vmatpush1.msra.mxu0 0.0
    %1051 = vmatprep.subr.mxu0 0.0
    %1052 = vmatpush1.msra.mxu0 0.0
    %1053 = vmatprep.subr.mxu0 0.0
    %1054 = vmatpush1.msra.mxu0 0.0
    %1055 = vmatprep.subr.mxu0 0.0
    %1056 = vmatpush1.msra.mxu0 0.0
    %1057 = vmatprep.subr.mxu0 0.0
    %1058 = vmatpush1.msra.mxu0 0.0
    %1059 = vmatprep.subr.mxu0 0.0
    %1060 = vmatpush1.msra.mxu0 0.0
    %1061 = vmatprep.subr.mxu0 0.0
    %v1062 = vand.u32 %v42, 4294901760
    %1063 = vmatpush1.msra.mxu0 %v1062
    %1064 = vmatprep.subr.mxu0 0.0
    %v1065 = vand.u32 %v41, 4294901760
    %1066 = vmatpush1.msra.mxu0 %v1065
    %1067 = vmatprep.subr.mxu0 0.0
    %1068 = vmatpush2.msra.mxu0 0.0
    %1069 = vmatprep.subr.mxu0 0.0
    %1070 = vmatpush2.msra.mxu0 0.0
    %1071 = vmatprep.subr.mxu0 0.0
    %1072 = vmatpush2.msra.mxu0 0.0
    %1073 = vmatprep.subr.mxu0 0.0
    %1074 = vmatpush2.msra.mxu0 0.0
    %1075 = vmatprep.subr.mxu0 0.0
    %1076 = vmatpush2.msra.mxu0 0.0
    %1077 = vmatprep.subr.mxu0 0.0
    %1078 = vmatpush2.msra.mxu0 0.0
    %1079 = vmatprep.subr.mxu0 0.0
    %1080 = vmatpush2.msra.mxu0 0.0
    %1081 = vmatprep.subr.mxu0 0.0
    %1082 = vmatpush2.msra.mxu0 0.0
    %1083 = vmatprep.subr.mxu0 0.0
    %1084 = vmatpush2.msra.mxu0 0.0
    %1085 = vmatprep.subr.mxu0 0.0
    %1086 = vmatpush2.msra.mxu0 0.0
    %1087 = vmatprep.subr.mxu0 0.0
    %1088 = vmatpush2.msra.mxu0 0.0
    %1089 = vmatprep.subr.mxu0 0.0
    %1090 = vmatpush2.msra.mxu0 0.0
    %1091 = vmatprep.subr.mxu0 0.0
    %1092 = vmatpush2.msra.mxu0 0.0
    %1093 = vmatprep.subr.mxu0 0.0
    %1094 = vmatpush2.msra.mxu0 0.0
    %1095 = vmatprep.subr.mxu0 0.0
    %1096 = vmatpush2.msra.mxu0 0.0
    %1097 = vmatprep.subr.mxu0 0.0
    %1098 = vmatpush2.msra.mxu0 0.0
    %1099 = vmatprep.mubr.f32.mxu0 0.0
    %v1100 = vand.u32 %v45, 4294901760
    %1101 = vmatmul.mubr.f32.gmra.mxu0 %v1100
    %v1102 = vpop.f32.mrf.mxu0
    %v1103 = vadd.f32 %v940, %v1102
    %v1104 = vpop.f32.mrf.mxu0
    %1105 = vmatprep.mubr.f32.mxu0 0.0
    %v1106 = vand.u32 %v48, 4294901760
    %1107 = vmatmul.mubr.f32.gmra.mxu0 %v1106
    %v1108 = vpop.f32.mrf.mxu0
    %v1109 = vadd.f32 %v946, %v1108
    %v1110 = vpop.f32.mrf.mxu0
    %1111 = vmatprep.mubr.f32.mxu0 0.0
    %v1112 = vand.u32 %v51, 4294901760
    %1113 = vmatmul.mubr.f32.gmra.mxu0 %v1112
    %v1114 = vpop.f32.mrf.mxu0
    %v1115 = vadd.f32 %v952, %v1114
    %v1116 = vpop.f32.mrf.mxu0
    %1117 = vmatprep.mubr.f32.mxu0 0.0
    %v1118 = vand.u32 %v54, 4294901760
    %1119 = vmatmul.mubr.f32.gmra.mxu0 %v1118
    %v1120 = vpop.f32.mrf.mxu0
    %v1121 = vadd.f32 %v958, %v1120
    %v1122 = vpop.f32.mrf.mxu0
    %1123 = vmatprep.mubr.f32.mxu0 0.0
    %v1124 = vand.u32 %v57, 4294901760
    %1125 = vmatmul.mubr.f32.gmra.mxu0 %v1124
    %v1126 = vpop.f32.mrf.mxu0
    %v1127 = vadd.f32 %v964, %v1126
    %v1128 = vpop.f32.mrf.mxu0
    %1129 = vmatprep.mubr.f32.mxu0 0.0
    %v1130 = vand.u32 %v60, 4294901760
    %1131 = vmatmul.mubr.f32.gmra.mxu0 %v1130
    %v1132 = vpop.f32.mrf.mxu0
    %v1133 = vadd.f32 %v970, %v1132
    %v1134 = vpop.f32.mrf.mxu0
    %1135 = vmatprep.mubr.f32.mxu0 0.0
    %v1136 = vand.u32 %v63, 4294901760
    %1137 = vmatmul.mubr.f32.gmra.mxu0 %v1136
    %v1138 = vpop.f32.mrf.mxu0
    %v1139 = vadd.f32 %v976, %v1138
    %v1140 = vpop.f32.mrf.mxu0
    %1141 = vmatprep.mubr.f32.mxu0 0.0
    %v1142 = vand.u32 %v66, 4294901760
    %1143 = vmatmul.mubr.f32.gmra.mxu0 %v1142
    %v1144 = vpop.f32.mrf.mxu0
    %v1145 = vadd.f32 %v982, %v1144
    %v1146 = vpop.f32.mrf.mxu0
    %1147 = vmatprep.mubr.f32.mxu0 0.0
    %v1148 = vand.u32 %v69, 4294901760
    %1149 = vmatmul.mubr.f32.gmra.mxu0 %v1148
    %v1150 = vpop.f32.mrf.mxu0
    %v1151 = vadd.f32 %v988, %v1150
    %v1152 = vpop.f32.mrf.mxu0
    %1153 = vmatprep.mubr.f32.mxu0 0.0
    %v1154 = vand.u32 %v72, 4294901760
    %1155 = vmatmul.mubr.f32.gmra.mxu0 %v1154
    %v1156 = vpop.f32.mrf.mxu0
    %v1157 = vadd.f32 %v994, %v1156
    %v1158 = vpop.f32.mrf.mxu0
    %1159 = vmatprep.mubr.f32.mxu0 0.0
    %v1160 = vand.u32 %v75, 4294901760
    %1161 = vmatmul.mubr.f32.gmra.mxu0 %v1160
    %v1162 = vpop.f32.mrf.mxu0
    %v1163 = vadd.f32 %v1000, %v1162
    %v1164 = vpop.f32.mrf.mxu0
    %1165 = vmatprep.mubr.f32.mxu0 0.0
    %v1166 = vand.u32 %v78, 4294901760
    %1167 = vmatmul.mubr.f32.gmra.mxu0 %v1166
    %v1168 = vpop.f32.mrf.mxu0
    %v1169 = vadd.f32 %v1006, %v1168
    %v1170 = vpop.f32.mrf.mxu0
    %1171 = vmatprep.mubr.f32.mxu0 0.0
    %v1172 = vand.u32 %v81, 4294901760
    %1173 = vmatmul.mubr.f32.gmra.mxu0 %v1172
    %v1174 = vpop.f32.mrf.mxu0
    %v1175 = vadd.f32 %v1012, %v1174
    %v1176 = vpop.f32.mrf.mxu0
    %1177 = vmatprep.mubr.f32.mxu0 0.0
    %v1178 = vand.u32 %v84, 4294901760
    %1179 = vmatmul.mubr.f32.gmra.mxu0 %v1178
    %v1180 = vpop.f32.mrf.mxu0
    %v1181 = vadd.f32 %v1018, %v1180
    %v1182 = vpop.f32.mrf.mxu0
    %1183 = vmatprep.mubr.f32.mxu0 0.0
    %v1184 = vand.u32 %v87, 4294901760
    %1185 = vmatmul.mubr.f32.gmra.mxu0 %v1184
    %v1186 = vpop.f32.mrf.mxu0
    %v1187 = vadd.f32 %v1024, %v1186
    %v1188 = vpop.f32.mrf.mxu0
    %1189 = vmatprep.mubr.f32.mxu0 0.0
    %v1190 = vand.u32 %v90, 4294901760
    %1191 = vmatmul.mubr.f32.gmra.mxu0 %v1190
    %v1192 = vpop.f32.mrf.mxu0
    %v1193 = vadd.f32 %v1030, %v1192
    %v1194 = vpop.f32.mrf.mxu0
    %1195 = vdwg.mxu0
    %vm1196 = vcmask 523264
    %1197 = vst.msk [vmem:[%s2] sm:$0xff] %vm1196, %v1103
    %1198 = vst.msk [vmem:[%s2 + $0x8] sm:$0xff] %vm1196, %v1109
    %1199 = vst.msk [vmem:[%s2 + $0x10] sm:$0xff] %vm1196, %v1115
    %1200 = vst.msk [vmem:[%s2 + $0x18] sm:$0xff] %vm1196, %v1121
    %1201 = vst.msk [vmem:[%s2 + $0x20] sm:$0xff] %vm1196, %v1127
    %1202 = vst.msk [vmem:[%s2 + $0x28] sm:$0xff] %vm1196, %v1133
    %1203 = vst.msk [vmem:[%s2 + $0x30] sm:$0xff] %vm1196, %v1139
    %1204 = vst.msk [vmem:[%s2 + $0x38] sm:$0xff] %vm1196, %v1145
    %1205 = vst.msk [vmem:[%s2 + $0x40] sm:$0xff] %vm1196, %v1151
    %1206 = vst.msk [vmem:[%s2 + $0x48] sm:$0xff] %vm1196, %v1157
    %1207 = vst.msk [vmem:[%s2 + $0x50] sm:$0xff] %vm1196, %v1163
    %1208 = vst.msk [vmem:[%s2 + $0x58] sm:$0xff] %vm1196, %v1169
    %1209 = vst.msk [vmem:[%s2 + $0x60] sm:$0xff] %vm1196, %v1175
    %1210 = vst.msk [vmem:[%s2 + $0x68] sm:$0xff] %vm1196, %v1181
    %1211 = vst.msk [vmem:[%s2 + $0x70] sm:$0xff] %vm1196, %v1187
    %1212 = vst.msk [vmem:[%s2 + $0x78] sm:$0xff] %vm1196, %v1193
    // Predicated region
    $region14: #{upsample_layer_forward.1} parent=1 // pred_check
      _
    $region15: #{upsample_layer_forward.1} parent=1 // pred_check_branch
      %1214 = sbr.rel (0) target = $region17
    $region16: #{upsample_layer_forward.1} parent=1 // pred_region
      _
    $region17: #{upsample_layer_forward.1} parent=1 // pred_fallthru
      _
    // Predicated region
    $region18: #{upsample_layer_forward.1} parent=1 // pred_check
      _
    $region19: #{upsample_layer_forward.1} parent=1 // pred_check_branch
      %1216 = sbr.rel (0) target = $region21
    $region20: #{upsample_layer_forward.1} parent=1 // pred_region
      _
    $region21: #{upsample_layer_forward.1} parent=1 // pred_fallthru
      _
    %1217 = vsyncpa [#allocation3], 1

</llo_original>
